<compile_context>
chip_gen: v7x
topology: tpu7x:2x2x1
jax: 0.10.0
libtpu: 0.0.40
codegen_flags: <defaults>
</compile_context>

<pallas_src>
import jax
import jax.numpy as jnp
from jax.experimental import pallas as pl
from jax.experimental.pallas import tpu as pltpu


def _daf_kernel(x_ref, r_ref, o_ref):
    # One lane-dense (block_rows, lanes) tile per grid step.
    o_ref[...] = x_ref[...] + r_ref[...]


def _sublane_multiple(dtype) -> int:
    # Sub-32-bit dtypes pack along sublanes: f32 -> 8, bf16 -> 16, int8/fp8 -> 32.
    itemsize = jnp.dtype(dtype).itemsize
    return max(8, 32 // max(1, itemsize))


def _vmem_plan():
    """Per-generation (target block bytes, scoped VMEM limit)."""
    try:
        vmem_cap = int(pltpu.get_tpu_info().vmem_capacity_bytes)
    except Exception:
        vmem_cap = 64 * 1024 * 1024  # conservative (v7x-sized) if query fails
    if vmem_cap >= 96 * 1024 * 1024:
        # v5e / v6e: 128 MiB physical VMEM; default scoped limit (16/32 MiB)
        # is too small for 8 MiB blocks double-buffered -> raise it.
        return 8 * 1024 * 1024, 64 * 1024 * 1024
    # v7x: 64 MiB physical per TC; never request the whole thing.
    return 4 * 1024 * 1024, 32 * 1024 * 1024


def daf_forward(x, residual):
    """DirectAddFuse: out = x + residual (same shape / dtype, any rank)."""
    assert x.shape == residual.shape, "x and residual must have the same shape"
    assert x.dtype == residual.dtype, "x and residual must have the same dtype"
    orig_shape = x.shape
    dtype = x.dtype
    itemsize = jnp.dtype(dtype).itemsize
    total = int(x.size)

    if total == 0:
        return x + residual

    # ---- lane-dense 2D view, no host-side copies in the common case ----------
    lanes = None
    for cand in (2048, 1024, 512, 384, 256, 128):
        if total % cand == 0:
            lanes = cand
            break

    xf = x.reshape(-1)
    rf = residual.reshape(-1)
    padded_total = total
    if lanes is None:
        # Rare ragged case (total not a multiple of 128): pad the flat tail.
        # This copies the operands; it only triggers for odd element counts.
        lanes = 128
        padded_total = pl.cdiv(total, lanes) * lanes
        pad = padded_total - total
        xf = jnp.pad(xf, (0, pad))
        rf = jnp.pad(rf, (0, pad))

    rows = padded_total // lanes
    x2 = xf.reshape(rows, lanes)  # contiguous reshape -> layout no-op
    r2 = rf.reshape(rows, lanes)

    # ---- block sizing ---------------------------------------------------------
    sublane = _sublane_multiple(dtype)
    target_block_bytes, vmem_limit = _vmem_plan()
    max_block_rows = max(sublane, target_block_bytes // (lanes * itemsize))

    if rows <= sublane:
        block_rows = rows  # full-dim block is always a legal block shape
    else:
        block_rows = min(max_block_rows, rows)
        # Aim for >= 2 grid steps: megacore sharding (v7x) + pipeline overlap.
        block_rows = min(block_rows, pl.cdiv(rows, 2))
        block_rows = ((block_rows + sublane - 1) // sublane) * sublane

    grid = pl.cdiv(rows, block_rows)  # partial last block handled by Pallas masking

    out2 = pl.pallas_call(
        _daf_kernel,
        out_shape=jax.ShapeDtypeStruct((rows, lanes), dtype),
        grid_spec=pltpu.PrefetchScalarGridSpec(
            num_scalar_prefetch=0,
            grid=(grid,),
            in_specs=[
                pl.BlockSpec((block_rows, lanes), lambda i: (i, 0)),
                pl.BlockSpec((block_rows, lanes), lambda i: (i, 0)),
            ],
            out_specs=pl.BlockSpec((block_rows, lanes), lambda i: (i, 0)),
        ),
        compiler_params=pltpu.CompilerParams(
            dimension_semantics=("parallel",),
            vmem_limit_bytes=vmem_limit,
        ),
    )(x2, r2)

    out = out2.reshape(-1)
    if padded_total != total:
        out = out[:total]
    return out.reshape(orig_shape)


if __name__ == "__main__":
    key = jax.random.PRNGKey(0)
    k1, k2, k3, k4, k5, k6, k7, k8 = jax.random.split(key, 8)

    # Case 1: small f32 input consistent with the module's forward.
    shape = (2, 4, 16, 16)
    x = jax.random.normal(k1, shape, jnp.float32)
    residual = jax.random.normal(k2, shape, jnp.float32)
    out = jax.block_until_ready(daf_forward(x, residual))
    assert out.shape == shape
    assert jnp.allclose(out, x + residual, atol=1e-6, rtol=1e-6), "f32 mismatch"

    # Case 2: larger 5D volume exercising multiple grid steps (tiled rows).
    shape2 = (2, 32, 16, 32, 32)
    x2 = jax.random.normal(k3, shape2, jnp.float32)
    r2 = jax.random.normal(k4, shape2, jnp.float32)
    out2 = jax.block_until_ready(daf_forward(x2, r2))
    assert out2.shape == shape2
    assert jnp.allclose(out2, x2 + r2, atol=1e-6, rtol=1e-6), "tiled f32 mismatch"

    # Case 3: bf16 (dtype-aware sublane rounding: 16-row multiples).
    shape3 = (8, 128, 128)
    x3 = jax.random.normal(k5, shape3, jnp.float32).astype(jnp.bfloat16)
    r3 = jax.random.normal(k6, shape3, jnp.float32).astype(jnp.bfloat16)
    out3 = jax.block_until_ready(daf_forward(x3, r3))
    assert out3.shape == shape3
    assert jnp.allclose(out3.astype(jnp.float32), (x3 + r3).astype(jnp.float32),
                        atol=1e-2, rtol=1e-2), "bf16 mismatch"

    # Case 4: ragged size (total % 128 != 0) exercising the fallback path.
    shape4 = (3, 5, 7)
    x4 = jax.random.normal(k7, shape4, jnp.float32)
    r4 = jax.random.normal(k8, shape4, jnp.float32)
    out4 = jax.block_until_ready(daf_forward(x4, r4))
    assert out4.shape == shape4
    assert jnp.allclose(out4, x4 + r4, atol=1e-6, rtol=1e-6), "ragged mismatch"

    print("KERNEL_OK")
</pallas_src>

<mosaic_0001>
module attributes {stable_mosaic.version = 11 : i64} {
  func.func @_daf_kernel(%arg0: i32, %arg1: memref<1x2048xf32, #tpu.memory_space<vmem>>, %arg2: memref<1x2048xf32, #tpu.memory_space<vmem>>, %arg3: memref<1x2048xf32, #tpu.memory_space<vmem>>) attributes {dimension_semantics = [#tpu.dimension_semantics<parallel>], iteration_bounds = array<i64: 1>, scalar_prefetch = 0 : i64, scratch_operands = 0 : i64, tpu.core_type = #tpu.core_type<tc>, window_params = [{transform_indices = @transform_0, window_bounds = array<i64: 1, 2048>}, {transform_indices = @transform_1, window_bounds = array<i64: 1, 2048>}, {transform_indices = @transform_2, window_bounds = array<i64: 1, 2048>}]} {
    %c0 = arith.constant 0 : index
    %c0_0 = arith.constant 0 : index
    %0 = vector.load %arg1[%c0, %c0_0] : memref<1x2048xf32, #tpu.memory_space<vmem>>, vector<1x2048xf32>
    %c0_1 = arith.constant 0 : index
    %c0_2 = arith.constant 0 : index
    %1 = vector.load %arg2[%c0_1, %c0_2] : memref<1x2048xf32, #tpu.memory_space<vmem>>, vector<1x2048xf32>
    %2 = arith.addf %0, %1 : vector<1x2048xf32>
    %c0_3 = arith.constant 0 : index
    %c0_4 = arith.constant 0 : index
    %3 = vector.load %arg3[%c0_3, %c0_4] : memref<1x2048xf32, #tpu.memory_space<vmem>>, vector<1x2048xf32>
    tpu.vector_store %arg3[%c0_3, %c0_4], %2 {strides = array<i32>} : memref<1x2048xf32, #tpu.memory_space<vmem>>, vector<1x2048xf32>,
    return
  }
  func.func @transform_0(%arg0: i32) -> (i32, i32) {
    %c0_i32 = arith.constant 0 : i32
    %c0_i32_0 = arith.constant 0 : i32
    return %arg0, %c0_i32 : i32, i32
  }
  func.func @transform_1(%arg0: i32) -> (i32, i32) {
    %c0_i32 = arith.constant 0 : i32
    %c0_i32_0 = arith.constant 0 : i32
    return %arg0, %c0_i32 : i32, i32
  }
  func.func @transform_2(%arg0: i32) -> (i32, i32) {
    %c0_i32 = arith.constant 0 : i32
    %c0_i32_0 = arith.constant 0 : i32
    return %arg0, %c0_i32 : i32, i32
  }
}

</mosaic_0001>

<llo_original>
// kernel: tpu_custom_call.1
$region0: #{tpu_custom_call.1}
  #allocation0 [shape = 'u32[]', space=smem, size = 0x4, offset = 0x4, fixed_abs, tag = 'smem constant byte address 0x4 - core index']
  #allocation1 [shape = 'u32[144,128]{1,0:T(1,128)}', space=vmem, size = 0x12000, scoped, tag = 'internal scratch']
  %s0 = inlined_call_operand.hbm [shape: f32[1,2048], index: 0, kind: input, shape index: {}]
  %s1 = inlined_call_operand.hbm [shape: f32[1,2048], index: 1, kind: input, shape index: {}]
  %s2 = inlined_call_operand.hbm [shape: f32[1,2048], index: 2, kind: output, shape index: {}]
  %s3 = sld [smem:[#allocation0]]
  $region26: #{tpu_custom_call.1} parent=0
    _
  %s5 = ssub.s32 1, %s3
  %s6 = scalar_select 0, %s5, %s3
  $region1: #{tpu_custom_call.1} parent=0
    #allocation2 [shape = 'u8[8192]{0}', space=vmem, size = 0x2000, scoped, tag = 'input window, operand 0, single buffered']
    #allocation3 [shape = 's32[1]{0}', space=sflag, size = 0x4, scoped, tag = 'scoped memory for tpu_custom_call.1']
    #allocation4 [shape = 's32[1]{0}', space=sflag, size = 0x4, scoped, tag = 'scoped memory for tpu_custom_call.1']
    #allocation5 [shape = 'u8[8192]{0}', space=vmem, size = 0x2000, scoped, tag = 'input window, operand 1, single buffered']
    #allocation6 [shape = 's32[1]{0}', space=sflag, size = 0x4, scoped, tag = 'scoped memory for tpu_custom_call.1']
    #allocation7 [shape = 'u8[8192]{0}', space=vmem, size = 0x2000, scoped, tag = 'output window, operand 0, single buffered']
    %7 = vsyncpa [#allocation3], 0
    %8 = vsyncpa [#allocation6], 0
    %9 = vsyncpa [#allocation4], 0
    // Predicated region
    $region2: #{tpu_custom_call.1} parent=1 // pred_check
      _
    $region3: #{tpu_custom_call.1} parent=1 // pred_check_branch
      %11 = sbr.rel (0) target = $region5
    $region4: #{tpu_custom_call.1} parent=1 // pred_region
      %s13 = ssub.s32 256, 256
      %14 = vsyncadd [#allocation3], %s13
      %s16 = sshll.u32 [#allocation2], 4
      %s17 = int_to_ptr.vmem [resolvable:$true] %s16
      %19 = dma.hbm_to_vmem [thread:$0]  %s0, 256, %s17, [#allocation3]
    $region5: #{tpu_custom_call.1} parent=1 // pred_fallthru
      _
    // Predicated region
    $region6: #{tpu_custom_call.1} parent=1 // pred_check
      _
    $region7: #{tpu_custom_call.1} parent=1 // pred_check_branch
      %21 = sbr.rel (0) target = $region9
    $region8: #{tpu_custom_call.1} parent=1 // pred_region
      %s23 = ssub.s32 256, 256
      %24 = vsyncadd [#allocation6], %s23
      %s26 = sshll.u32 [#allocation5], 4
      %s27 = int_to_ptr.vmem [resolvable:$true] %s26
      %29 = dma.hbm_to_vmem [thread:$0]  %s1, 256, %s27, [#allocation6]
    $region9: #{tpu_custom_call.1} parent=1 // pred_fallthru
      _
    // Predicated region
    $region10: #{tpu_custom_call.1} parent=1 // pred_check
      _
    $region11: #{tpu_custom_call.1} parent=1 // pred_check_branch
      %31 = sbr.rel (0) target = $region13
    $region12: #{tpu_custom_call.1} parent=1 // pred_region
      %32 = dma.done [#allocation3], 256
    $region13: #{tpu_custom_call.1} parent=1 // pred_fallthru
      _
    // Predicated region
    $region14: #{tpu_custom_call.1} parent=1 // pred_check
      _
    $region15: #{tpu_custom_call.1} parent=1 // pred_check_branch
      %34 = sbr.rel (0) target = $region17
    $region16: #{tpu_custom_call.1} parent=1 // pred_region
      %35 = dma.done [#allocation6], 256
    $region17: #{tpu_custom_call.1} parent=1 // pred_fallthru
      _
    %v36 = vld [vmem:[#allocation2] sm:$0xff]
    %v37 = vld [vmem:[#allocation2 + $0x8] sm:$0xff]
    %v38 = vld [vmem:[#allocation5] sm:$0xff]
    %v39 = vld [vmem:[#allocation5 + $0x8] sm:$0xff]
    %v40 = vadd.f32 %v36, %v38
    %v41 = vadd.f32 %v37, %v39
    %42 = vst [vmem:[#allocation7] sm:$0xff] %v40
    %43 = vst [vmem:[#allocation7 + $0x8] sm:$0xff] %v41
    // Predicated region
    $region18: #{tpu_custom_call.1} parent=1 // pred_check
      _
    $region19: #{tpu_custom_call.1} parent=1 // pred_check_branch
      %45 = sbr.rel (0) target = $region21
    $region20: #{tpu_custom_call.1} parent=1 // pred_region
      %s47 = ssub.s32 256, 256
      %48 = vsyncadd [#allocation4], %s47
      %s50 = sshll.u32 [#allocation7], 4
      %s51 = int_to_ptr.vmem [resolvable:$true] %s50
      %53 = dma.vmem_to_hbm [thread:$0]  %s51, 256, %s2, [#allocation4]
    $region21: #{tpu_custom_call.1} parent=1 // pred_fallthru
      _
    // Predicated region
    $region22: #{tpu_custom_call.1} parent=1 // pred_check
      _
    $region23: #{tpu_custom_call.1} parent=1 // pred_check_branch
      %55 = sbr.rel (0) target = $region25
    $region24: #{tpu_custom_call.1} parent=1 // pred_region
      %56 = dma.done [#allocation4], 256
    $region25: #{tpu_custom_call.1} parent=1 // pred_fallthru
      _
    %57 = vsyncpa [#allocation3], 1
    %58 = vsyncpa [#allocation6], 1
    %59 = vsyncpa [#allocation4], 1

</llo_original>
